<compile_context>
chip_gen: v6e
topology: v6e:2x2x1
jax: 0.10.0
libtpu: 0.0.40
codegen_flags: <defaults>
</compile_context>

<pallas_src>
import jax
import jax.numpy as jnp
from jax import lax
from jax.experimental import pallas as pl
from jax.experimental.pallas import tpu as pltpu


# TODO(synk): tune per generation (v7x physical VMEM is 64 MiB; v5e/v6e 128 MiB).
_VMEM_LIMIT = 48 * 1024 * 1024


def _round_up(n, m):
    return ((n + m - 1) // m) * m


def _pad2(a, rows, cols):
    return jnp.pad(a, ((0, rows - a.shape[0]), (0, cols - a.shape[1])))


def _unroll(n):
    # Full unroll only for short recurrences; bounded unroll at production
    # lengths to avoid instruction-memory / vreg-live-range blowup.
    return True if n <= 16 else 8


# ----------------------------------------------------------------------------
# Pallas kernels (one launch for the whole encoder, one for the whole decoder)
# ----------------------------------------------------------------------------
def _encoder_bridge_kernel(xproj_ref, w_hh_ref, second_ref,
                           w2_ref, b2_ref, w_bh_ref, w_bs_ref, b_b_ref,
                           mem_ref, enc_final_ref, dec_init_ref):
    """tanh-RNN over pre-projected src + fused second_encoder + bridge."""
    S, B, H = xproj_ref.shape
    w_hh = w_hh_ref[...]                      # loop-invariant, hoisted

    def step(t, h_prev):
        # Only op on the serial dependency chain: one (B,H)@(H,H) MXU call.
        h_new = jnp.tanh(
            xproj_ref[t]
            + jnp.dot(h_prev, w_hh, preferred_element_type=jnp.float32))
        mem_ref[t] = h_new                    # lane/sublane-dense vreg store (VMEM)
        return h_new

    h_last = lax.fori_loop(0, S, step, jnp.zeros((B, H), jnp.float32),
                           unroll=_unroll(S))
    enc_final_ref[...] = h_last               # written once, after the loop

    # second_encoder (linear + tanh) fused with the bridge to the initial decoder state.
    feat = jnp.tanh(
        jnp.dot(second_ref[...], w2_ref[...], preferred_element_type=jnp.float32)
        + b2_ref[...])
    dec_init_ref[...] = jnp.tanh(
        jnp.dot(h_last, w_bh_ref[...], preferred_element_type=jnp.float32)
        + jnp.dot(feat, w_bs_ref[...], preferred_element_type=jnp.float32)
        + b_b_ref[...])


def _decoder_kernel(xproj_ref, mem_ref, len_ref, h0_ref,
                    w_hh_ref, w_oc_ref, w_oh_ref, b_o_ref,
                    out_ref, attn_ref, h_last_ref, h_scratch):
    """tanh-RNN scan, then batched masked Luong attention + output projection."""
    T, B, H = xproj_ref.shape
    S = mem_ref.shape[0]

    # ---- Phase 1: the serial recurrence (only the dependency chain) ----------
    w_hh = w_hh_ref[...]

    def step(t, h_prev):
        h_new = jnp.tanh(
            xproj_ref[t]
            + jnp.dot(h_prev, w_hh, preferred_element_type=jnp.float32))
        h_scratch[t] = h_new                  # full (8,128)-dense VMEM store
        return h_new

    h_last = lax.fori_loop(0, T, step, h0_ref[...], unroll=_unroll(T))
    h_last_ref[...] = h_last                  # written once, after the loop

    # ---- Phase 2: attention + projection for all T steps (off the serial path)
    # Length mask built in-kernel from lengths (no (B,S) f32 mask DMA'd from HBM).
    valid = lax.broadcasted_iota(jnp.int32, (B, S), 1) < len_ref[...]   # (B, S)
    neg = jnp.float32(-1e30)                  # scores stay f32; safe mask constant
    w_oc = w_oc_ref[...].astype(jnp.bfloat16)
    w_oh = w_oh_ref[...].astype(jnp.bfloat16)
    bias = pl.broadcast_to(b_o_ref[...], (T, H))   # hoisted bias broadcast

    # TODO(synk): at production batch sizes turn this static loop into a
    # "parallel" grid axis (megacore on v7x); each iteration is already an
    # MXU-shaped per-sequence attention block (flash-attention structure).
    for b in range(B):
        h_b = h_scratch[:, b, :]                                   # (T, H)
        m_b = mem_ref[:, b, :]                                     # (S, H)
        h16 = h_b.astype(jnp.bfloat16)
        m16 = m_b.astype(jnp.bfloat16)

        # Masked Luong dot attention (scores/softmax accumulate in f32).
        scores = jnp.einsum('th,sh->ts', h16, m16,
                            preferred_element_type=jnp.float32)    # (T, S)
        scores = jnp.where(valid[b:b + 1, :], scores, neg)
        mx = scores.max(axis=-1, keepdims=True)
        p = jnp.exp(scores - mx)
        attn = p * pl.reciprocal(p.sum(axis=-1, keepdims=True), approx=True)
        ctx = jnp.dot(attn.astype(jnp.bfloat16), m16,
                      preferred_element_type=jnp.float32)          # (T, H)

        out = jnp.tanh(
            jnp.dot(ctx.astype(jnp.bfloat16), w_oc, preferred_element_type=jnp.float32)
            + jnp.dot(h16, w_oh, preferred_element_type=jnp.float32)
            + bias)

        out_ref[:, b, :] = out
        attn_ref[:, b, :] = attn


# ----------------------------------------------------------------------------
# Wrappers around pallas_call (single invocation each, whole arrays in VMEM)
# ----------------------------------------------------------------------------
def run_text_encoder_and_bridge(src_proj, second_src, params):
    S, B, H = src_proj.shape
    mem, enc_final, dec_init = pl.pallas_call(
        _encoder_bridge_kernel,
        out_shape=(jax.ShapeDtypeStruct((S, B, H), jnp.float32),
                   jax.ShapeDtypeStruct((B, H), jnp.float32),
                   jax.ShapeDtypeStruct((B, H), jnp.float32)),
        compiler_params=pltpu.CompilerParams(vmem_limit_bytes=_VMEM_LIMIT),
    )(src_proj, params['enc_w_hh'], second_src,
      params['w2'], params['b2'], params['w_bh'], params['w_bs'], params['b_b'])
    return mem, enc_final, dec_init


def run_attn_decoder(tgt_proj, memory_bank, lengths2d, dec_init, params):
    T, B, H = tgt_proj.shape
    S = memory_bank.shape[0]
    outs, attns, h_last = pl.pallas_call(
        _decoder_kernel,
        out_shape=(jax.ShapeDtypeStruct((T, B, H), jnp.float32),
                   jax.ShapeDtypeStruct((T, B, S), jnp.float32),
                   jax.ShapeDtypeStruct((B, H), jnp.float32)),
        scratch_shapes=[pltpu.VMEM((T, B, H), jnp.float32)],   # h_t history
        compiler_params=pltpu.CompilerParams(vmem_limit_bytes=_VMEM_LIMIT),
    )(tgt_proj, memory_bank, lengths2d, dec_init,
      params['dec_w_hh'], params['w_oc'], params['w_oh'], params['b_o'])
    return outs, attns, h_last


# ----------------------------------------------------------------------------
# MultiModalModel (concrete JAX/Pallas instantiation)
# ----------------------------------------------------------------------------
class MultiModalModel:
    def __init__(self, params, second_dim):
        emb = params['src_embed'].shape[1]
        hidden = params['enc_w_hh'].shape[0]
        self.H = hidden
        self.HP = _round_up(max(hidden, 128), 128)   # lane-dense hidden dim
        HP = self.HP
        self.second_dim = second_dim
        # generator is held but not applied in forward(), matching the reference
        # module (the generator runs outside the model's forward in ONMT).
        self.generator = params['gen_w']

        # Zero-padded weights: padded hidden lanes stay exactly zero through the
        # recurrence / attention / projection, so logical semantics are unchanged.
        self.params = {
            'enc_w_hh': _pad2(params['enc_w_hh'], HP, HP),
            'dec_w_hh': _pad2(params['dec_w_hh'], HP, HP),
            'w2':       params['w2'],
            'b2':       params['b2'],
            'w_bh':     _pad2(params['w_bh'], HP, HP),
            'w_bs':     _pad2(params['w_bs'], params['w_bs'].shape[0], HP),
            'b_b':      _pad2(params['b_b'], 1, HP),
            'w_oc':     _pad2(params['w_oc'], HP, HP),
            'w_oh':     _pad2(params['w_oh'], HP, HP),
            'b_o':      _pad2(params['b_o'], 1, HP),
        }

        # Hoisted (non-recurrent) input projections.  Fold W_ih into the embedding
        # table only when it does not inflate per-token gather traffic (HP <= E);
        # otherwise gather the embeddings and do one batched matmul outside the
        # kernel.  Either way, nothing but h_prev @ W_hh remains on the serial path.
        enc_w_ih = _pad2(params['enc_w_ih'], emb, HP)
        dec_w_ih = _pad2(params['dec_w_ih'], emb, HP)
        enc_b = _pad2(params['enc_b'], 1, HP)
        dec_b = _pad2(params['dec_b'], 1, HP)
        self._fold = HP <= emb
        if self._fold:
            self._src_proj = (params['src_embed'] @ enc_w_ih + enc_b,)
            self._tgt_proj = (params['tgt_embed'] @ dec_w_ih + dec_b,)
        else:
            self._src_proj = (params['src_embed'], enc_w_ih, enc_b)
            self._tgt_proj = (params['tgt_embed'], dec_w_ih, dec_b)

    # -- helpers --------------------------------------------------------------
    def _project(self, proj, tokens):
        if self._fold:
            return jnp.take(proj[0], tokens, axis=0)                 # (L, B, HP)
        table, w_ih, bias = proj
        emb = jnp.take(table, tokens, axis=0)                        # (L, B, E)
        return jnp.dot(emb, w_ih) + bias                             # (L, B, HP)

    @staticmethod
    def _pad_batch_tokens(tokens, BP):
        return jnp.pad(tokens, ((0, 0), (0, BP - tokens.shape[1])))

    # -- reference API ---------------------------------------------------------
    def run_encoder_to_decoder_state(self, src, second_src, lengths):
        # TODO(synk): abstract (NotImplementedError) in the reference; this is a
        # concrete tanh-RNN encoder + linear second_encoder + tanh bridge, fused
        # into a single Pallas kernel launch.
        del lengths  # masking is applied in the attention, not in the encoder
        B = src.shape[1]
        BP = _round_up(max(B, 8), 8)
        src_p = self._pad_batch_tokens(src, BP)
        second_p = jnp.pad(second_src, ((0, BP - B), (0, 0)))
        src_proj = self._project(self._src_proj, src_p)              # (S, BP, HP)
        memory_bank, enc_final, dec_state = run_text_encoder_and_bridge(
            src_proj, second_p, self.params)
        return enc_final, memory_bank, dec_state

    def run_decoder(self, tgt, memory_bank, dec_init, memory_lengths, second_src):
        del second_src
        S, BP, _ = memory_bank.shape
        B = tgt.shape[1]
        tgt_p = self._pad_batch_tokens(tgt, BP)
        tgt_proj = self._project(self._tgt_proj, tgt_p)              # (T-1, BP, HP)
        # Padded batch rows get length = S so padding never creates zero-length
        # (degenerate) softmax rows; they are sliced away in forward().
        lengths_p = jnp.concatenate(
            [memory_lengths.astype(jnp.int32),
             jnp.full((BP - B,), S, jnp.int32)]).reshape(-1, 1)      # (BP, 1)
        outs, attns, h_last = run_attn_decoder(
            tgt_proj, memory_bank, lengths_p, dec_init, self.params)
        return outs, h_last, {'std': attns}

    def forward(self, src, second_src, tgt, lengths, dec_state=None):
        tgt = tgt[:-1]
        B, H = src.shape[1], self.H
        _, memory_bank, enc_state = self.run_encoder_to_decoder_state(
            src, second_src, lengths)
        if dec_state is not None:
            dec_state = _pad2(dec_state, enc_state.shape[0], enc_state.shape[1])
        decoder_outputs, dec_state, attns = self.run_decoder(
            tgt, memory_bank, enc_state if dec_state is None else dec_state,
            lengths, second_src)
        # Strip the sublane/lane padding (presentation only; padded entries are
        # exactly zero / unused by construction of the zero-padded weights).
        return (decoder_outputs[:, :B, :H],
                {'std': attns['std'][:, :B, :]},
                dec_state[:B, :H])


# ----------------------------------------------------------------------------
# Deterministic parameter construction
# ----------------------------------------------------------------------------
def make_params(key, vocab=50, emb=32, hidden=32, second_in=16, second_dim=16):
    ks = jax.random.split(key, 16)
    n = lambda k, shape, s=0.1: (s * jax.random.normal(k, shape)).astype(jnp.float32)
    return {
        'src_embed': n(ks[0], (vocab, emb)),
        'tgt_embed': n(ks[1], (vocab, emb)),
        'enc_w_ih': n(ks[2], (emb, hidden)),
        'enc_w_hh': n(ks[3], (hidden, hidden)),
        'enc_b':    n(ks[4], (1, hidden)),
        'w2':       n(ks[5], (second_in, second_dim)),
        'b2':       n(ks[6], (1, second_dim)),
        'w_bh':     n(ks[7], (hidden, hidden)),
        'w_bs':     n(ks[8], (second_dim, hidden)),
        'b_b':      n(ks[9], (1, hidden)),
        'dec_w_ih': n(ks[10], (emb, hidden)),
        'dec_w_hh': n(ks[11], (hidden, hidden)),
        'dec_b':    n(ks[12], (1, hidden)),
        'w_oc':     n(ks[13], (hidden, hidden)),
        'w_oh':     n(ks[14], (hidden, hidden)),
        'b_o':      n(ks[15], (1, hidden)),
        'gen_w':    jnp.eye(hidden, vocab, dtype=jnp.float32),
    }


if __name__ == "__main__":
    key = jax.random.PRNGKey(0)
    k_param, k_src, k_tgt, k_2nd = jax.random.split(key, 4)

    S, T, B = 8, 7, 4            # src len, tgt len (before [:-1]), batch
    VOCAB, EMB, H = 50, 32, 32
    SECOND_IN, SECOND_DIM = 16, 16

    params = make_params(k_param, VOCAB, EMB, H, SECOND_IN, SECOND_DIM)
    model = MultiModalModel(params, SECOND_DIM)

    src = jax.random.randint(k_src, (S, B), 0, VOCAB)             # (src_len, batch)
    tgt = jax.random.randint(k_tgt, (T, B), 0, VOCAB)             # (tgt_len, batch)
    second_src = (0.1 * jax.random.normal(k_2nd, (B, SECOND_IN))).astype(jnp.float32)
    lengths = jnp.array([8, 6, 5, 8], dtype=jnp.int32)

    dec_outs, attns, dec_state = model.forward(src, second_src, tgt, lengths)
    jax.block_until_ready((dec_outs, attns['std'], dec_state))

    assert dec_outs.shape == (T - 1, B, H)
    assert attns['std'].shape == (T - 1, B, S)
    assert dec_state.shape == (B, H)
    assert bool(jnp.all(jnp.isfinite(dec_outs)))
    assert bool(jnp.all(jnp.isfinite(attns['std'])))
    # attention rows over valid positions sum to ~1 (approx reciprocal on the EUP)
    assert bool(jnp.allclose(attns['std'].sum(-1), 1.0, atol=5e-3))
    # masked (padded) positions get zero attention
    pad_mask = (jnp.arange(S)[None, None, :] >= lengths[None, :, None])
    assert bool(jnp.all(jnp.where(pad_mask, attns['std'], 0.0) < 1e-6))

    print("KERNEL_OK")
</pallas_src>

<mosaic_0001>
module attributes {stable_mosaic.version = 11 : i64} {
  func.func @_encoder_bridge_kernel(%arg0: memref<8x8x128xf32, #tpu.memory_space<vmem>>, %arg1: memref<128x128xf32, #tpu.memory_space<vmem>>, %arg2: memref<8x16xf32, #tpu.memory_space<vmem>>, %arg3: memref<16x16xf32, #tpu.memory_space<vmem>>, %arg4: memref<1x16xf32, #tpu.memory_space<vmem>>, %arg5: memref<128x128xf32, #tpu.memory_space<vmem>>, %arg6: memref<16x128xf32, #tpu.memory_space<vmem>>, %arg7: memref<1x128xf32, #tpu.memory_space<vmem>>, %arg8: memref<8x8x128xf32, #tpu.memory_space<vmem>>, %arg9: memref<8x128xf32, #tpu.memory_space<vmem>>, %arg10: memref<8x128xf32, #tpu.memory_space<vmem>>) attributes {dimension_semantics = [], scalar_prefetch = 0 : i64, scratch_operands = 0 : i64, tpu.core_type = #tpu.core_type<tc>} {
    %c0 = arith.constant 0 : index
    %c0_0 = arith.constant 0 : index
    %0 = vector.load %arg1[%c0, %c0_0] : memref<128x128xf32, #tpu.memory_space<vmem>>, vector<128x128xf32>
    %cst = arith.constant 0.000000e+00 : f32
    %1 = vector.broadcast %cst : f32 to vector<8x128xf32>
    %c0_i32 = arith.constant 0 : i32
    %2 = arith.index_cast %c0_i32 : i32 to index
    %c0_1 = arith.constant 0 : index
    %c0_2 = arith.constant 0 : index
    %3 = vector.load %arg0[%2, %c0_1, %c0_2] : memref<8x8x128xf32, #tpu.memory_space<vmem>>, vector<1x8x128xf32>
    %4 = vector.shape_cast %3 : vector<1x8x128xf32> to vector<8x128xf32>
    %cst_3 = arith.constant dense<0.000000e+00> : vector<8x128xf32>
    %5 = tpu.matmul %1, %0, %cst_3 {dimension_numbers = #tpu.dot_dimension_numbers<[1], [0], [0], [1], [0, 0, 1, 1], [], []>} : vector<8x128xf32>, vector<128x128xf32>, vector<8x128xf32> -> vector<8x128xf32>
    %6 = arith.addf %4, %5 : vector<8x128xf32>
    %7 = math.tanh %6 : vector<8x128xf32>
    %8 = arith.index_cast %c0_i32 : i32 to index
    %c0_4 = arith.constant 0 : index
    %c0_5 = arith.constant 0 : index
    %9 = vector.load %arg8[%8, %c0_4, %c0_5] : memref<8x8x128xf32, #tpu.memory_space<vmem>>, vector<1x8x128xf32>
    %10 = vector.shape_cast %9 : vector<1x8x128xf32> to vector<8x128xf32>
    %11 = vector.shape_cast %7 : vector<8x128xf32> to vector<1x8x128xf32>
    tpu.vector_store %arg8[%8, %c0_4, %c0_5], %11 {strides = array<i32>} : memref<8x8x128xf32, #tpu.memory_space<vmem>>, vector<1x8x128xf32>,
    %c1_i32 = arith.constant 1 : i32
    %12 = arith.index_cast %c1_i32 : i32 to index
    %c0_6 = arith.constant 0 : index
    %c0_7 = arith.constant 0 : index
    %13 = vector.load %arg0[%12, %c0_6, %c0_7] : memref<8x8x128xf32, #tpu.memory_space<vmem>>, vector<1x8x128xf32>
    %14 = vector.shape_cast %13 : vector<1x8x128xf32> to vector<8x128xf32>
    %cst_8 = arith.constant dense<0.000000e+00> : vector<8x128xf32>
    %15 = tpu.matmul %7, %0, %cst_8 {dimension_numbers = #tpu.dot_dimension_numbers<[1], [0], [0], [1], [0, 0, 1, 1], [], []>} : vector<8x128xf32>, vector<128x128xf32>, vector<8x128xf32> -> vector<8x128xf32>
    %16 = arith.addf %14, %15 : vector<8x128xf32>
    %17 = math.tanh %16 : vector<8x128xf32>
    %18 = arith.index_cast %c1_i32 : i32 to index
    %c0_9 = arith.constant 0 : index
    %c0_10 = arith.constant 0 : index
    %19 = vector.load %arg8[%18, %c0_9, %c0_10] : memref<8x8x128xf32, #tpu.memory_space<vmem>>, vector<1x8x128xf32>
    %20 = vector.shape_cast %19 : vector<1x8x128xf32> to vector<8x128xf32>
    %21 = vector.shape_cast %17 : vector<8x128xf32> to vector<1x8x128xf32>
    tpu.vector_store %arg8[%18, %c0_9, %c0_10], %21 {strides = array<i32>} : memref<8x8x128xf32, #tpu.memory_space<vmem>>, vector<1x8x128xf32>,
    %c2_i32 = arith.constant 2 : i32
    %22 = arith.index_cast %c2_i32 : i32 to index
    %c0_11 = arith.constant 0 : index
    %c0_12 = arith.constant 0 : index
    %23 = vector.load %arg0[%22, %c0_11, %c0_12] : memref<8x8x128xf32, #tpu.memory_space<vmem>>, vector<1x8x128xf32>
    %24 = vector.shape_cast %23 : vector<1x8x128xf32> to vector<8x128xf32>
    %cst_13 = arith.constant dense<0.000000e+00> : vector<8x128xf32>
    %25 = tpu.matmul %17, %0, %cst_13 {dimension_numbers = #tpu.dot_dimension_numbers<[1], [0], [0], [1], [0, 0, 1, 1], [], []>} : vector<8x128xf32>, vector<128x128xf32>, vector<8x128xf32> -> vector<8x128xf32>
    %26 = arith.addf %24, %25 : vector<8x128xf32>
    %27 = math.tanh %26 : vector<8x128xf32>
    %28 = arith.index_cast %c2_i32 : i32 to index
    %c0_14 = arith.constant 0 : index
    %c0_15 = arith.constant 0 : index
    %29 = vector.load %arg8[%28, %c0_14, %c0_15] : memref<8x8x128xf32, #tpu.memory_space<vmem>>, vector<1x8x128xf32>
    %30 = vector.shape_cast %29 : vector<1x8x128xf32> to vector<8x128xf32>
    %31 = vector.shape_cast %27 : vector<8x128xf32> to vector<1x8x128xf32>
    tpu.vector_store %arg8[%28, %c0_14, %c0_15], %31 {strides = array<i32>} : memref<8x8x128xf32, #tpu.memory_space<vmem>>, vector<1x8x128xf32>,
    %c3_i32 = arith.constant 3 : i32
    %32 = arith.index_cast %c3_i32 : i32 to index
    %c0_16 = arith.constant 0 : index
    %c0_17 = arith.constant 0 : index
    %33 = vector.load %arg0[%32, %c0_16, %c0_17] : memref<8x8x128xf32, #tpu.memory_space<vmem>>, vector<1x8x128xf32>
    %34 = vector.shape_cast %33 : vector<1x8x128xf32> to vector<8x128xf32>
    %cst_18 = arith.constant dense<0.000000e+00> : vector<8x128xf32>
    %35 = tpu.matmul %27, %0, %cst_18 {dimension_numbers = #tpu.dot_dimension_numbers<[1], [0], [0], [1], [0, 0, 1, 1], [], []>} : vector<8x128xf32>, vector<128x128xf32>, vector<8x128xf32> -> vector<8x128xf32>
    %36 = arith.addf %34, %35 : vector<8x128xf32>
    %37 = math.tanh %36 : vector<8x128xf32>
    %38 = arith.index_cast %c3_i32 : i32 to index
    %c0_19 = arith.constant 0 : index
    %c0_20 = arith.constant 0 : index
    %39 = vector.load %arg8[%38, %c0_19, %c0_20] : memref<8x8x128xf32, #tpu.memory_space<vmem>>, vector<1x8x128xf32>
    %40 = vector.shape_cast %39 : vector<1x8x128xf32> to vector<8x128xf32>
    %41 = vector.shape_cast %37 : vector<8x128xf32> to vector<1x8x128xf32>
    tpu.vector_store %arg8[%38, %c0_19, %c0_20], %41 {strides = array<i32>} : memref<8x8x128xf32, #tpu.memory_space<vmem>>, vector<1x8x128xf32>,
    %c4_i32 = arith.constant 4 : i32
    %42 = arith.index_cast %c4_i32 : i32 to index
    %c0_21 = arith.constant 0 : index
    %c0_22 = arith.constant 0 : index
    %43 = vector.load %arg0[%42, %c0_21, %c0_22] : memref<8x8x128xf32, #tpu.memory_space<vmem>>, vector<1x8x128xf32>
    %44 = vector.shape_cast %43 : vector<1x8x128xf32> to vector<8x128xf32>
    %cst_23 = arith.constant dense<0.000000e+00> : vector<8x128xf32>
    %45 = tpu.matmul %37, %0, %cst_23 {dimension_numbers = #tpu.dot_dimension_numbers<[1], [0], [0], [1], [0, 0, 1, 1], [], []>} : vector<8x128xf32>, vector<128x128xf32>, vector<8x128xf32> -> vector<8x128xf32>
    %46 = arith.addf %44, %45 : vector<8x128xf32>
    %47 = math.tanh %46 : vector<8x128xf32>
    %48 = arith.index_cast %c4_i32 : i32 to index
    %c0_24 = arith.constant 0 : index
    %c0_25 = arith.constant 0 : index
    %49 = vector.load %arg8[%48, %c0_24, %c0_25] : memref<8x8x128xf32, #tpu.memory_space<vmem>>, vector<1x8x128xf32>
    %50 = vector.shape_cast %49 : vector<1x8x128xf32> to vector<8x128xf32>
    %51 = vector.shape_cast %47 : vector<8x128xf32> to vector<1x8x128xf32>
    tpu.vector_store %arg8[%48, %c0_24, %c0_25], %51 {strides = array<i32>} : memref<8x8x128xf32, #tpu.memory_space<vmem>>, vector<1x8x128xf32>,
    %c5_i32 = arith.constant 5 : i32
    %52 = arith.index_cast %c5_i32 : i32 to index
    %c0_26 = arith.constant 0 : index
    %c0_27 = arith.constant 0 : index
    %53 = vector.load %arg0[%52, %c0_26, %c0_27] : memref<8x8x128xf32, #tpu.memory_space<vmem>>, vector<1x8x128xf32>
    %54 = vector.shape_cast %53 : vector<1x8x128xf32> to vector<8x128xf32>
    %cst_28 = arith.constant dense<0.000000e+00> : vector<8x128xf32>
    %55 = tpu.matmul %47, %0, %cst_28 {dimension_numbers = #tpu.dot_dimension_numbers<[1], [0], [0], [1], [0, 0, 1, 1], [], []>} : vector<8x128xf32>, vector<128x128xf32>, vector<8x128xf32> -> vector<8x128xf32>
    %56 = arith.addf %54, %55 : vector<8x128xf32>
    %57 = math.tanh %56 : vector<8x128xf32>
    %58 = arith.index_cast %c5_i32 : i32 to index
    %c0_29 = arith.constant 0 : index
    %c0_30 = arith.constant 0 : index
    %59 = vector.load %arg8[%58, %c0_29, %c0_30] : memref<8x8x128xf32, #tpu.memory_space<vmem>>, vector<1x8x128xf32>
    %60 = vector.shape_cast %59 : vector<1x8x128xf32> to vector<8x128xf32>
    %61 = vector.shape_cast %57 : vector<8x128xf32> to vector<1x8x128xf32>
    tpu.vector_store %arg8[%58, %c0_29, %c0_30], %61 {strides = array<i32>} : memref<8x8x128xf32, #tpu.memory_space<vmem>>, vector<1x8x128xf32>,
    %c6_i32 = arith.constant 6 : i32
    %62 = arith.index_cast %c6_i32 : i32 to index
    %c0_31 = arith.constant 0 : index
    %c0_32 = arith.constant 0 : index
    %63 = vector.load %arg0[%62, %c0_31, %c0_32] : memref<8x8x128xf32, #tpu.memory_space<vmem>>, vector<1x8x128xf32>
    %64 = vector.shape_cast %63 : vector<1x8x128xf32> to vector<8x128xf32>
    %cst_33 = arith.constant dense<0.000000e+00> : vector<8x128xf32>
    %65 = tpu.matmul %57, %0, %cst_33 {dimension_numbers = #tpu.dot_dimension_numbers<[1], [0], [0], [1], [0, 0, 1, 1], [], []>} : vector<8x128xf32>, vector<128x128xf32>, vector<8x128xf32> -> vector<8x128xf32>
    %66 = arith.addf %64, %65 : vector<8x128xf32>
    %67 = math.tanh %66 : vector<8x128xf32>
    %68 = arith.index_cast %c6_i32 : i32 to index
    %c0_34 = arith.constant 0 : index
    %c0_35 = arith.constant 0 : index
    %69 = vector.load %arg8[%68, %c0_34, %c0_35] : memref<8x8x128xf32, #tpu.memory_space<vmem>>, vector<1x8x128xf32>
    %70 = vector.shape_cast %69 : vector<1x8x128xf32> to vector<8x128xf32>
    %71 = vector.shape_cast %67 : vector<8x128xf32> to vector<1x8x128xf32>
    tpu.vector_store %arg8[%68, %c0_34, %c0_35], %71 {strides = array<i32>} : memref<8x8x128xf32, #tpu.memory_space<vmem>>, vector<1x8x128xf32>,
    %c7_i32 = arith.constant 7 : i32
    %72 = arith.index_cast %c7_i32 : i32 to index
    %c0_36 = arith.constant 0 : index
    %c0_37 = arith.constant 0 : index
    %73 = vector.load %arg0[%72, %c0_36, %c0_37] : memref<8x8x128xf32, #tpu.memory_space<vmem>>, vector<1x8x128xf32>
    %74 = vector.shape_cast %73 : vector<1x8x128xf32> to vector<8x128xf32>
    %cst_38 = arith.constant dense<0.000000e+00> : vector<8x128xf32>
    %75 = tpu.matmul %67, %0, %cst_38 {dimension_numbers = #tpu.dot_dimension_numbers<[1], [0], [0], [1], [0, 0, 1, 1], [], []>} : vector<8x128xf32>, vector<128x128xf32>, vector<8x128xf32> -> vector<8x128xf32>
    %76 = arith.addf %74, %75 : vector<8x128xf32>
    %77 = math.tanh %76 : vector<8x128xf32>
    %78 = arith.index_cast %c7_i32 : i32 to index
    %c0_39 = arith.constant 0 : index
    %c0_40 = arith.constant 0 : index
    %79 = vector.load %arg8[%78, %c0_39, %c0_40] : memref<8x8x128xf32, #tpu.memory_space<vmem>>, vector<1x8x128xf32>
    %80 = vector.shape_cast %79 : vector<1x8x128xf32> to vector<8x128xf32>
    %81 = vector.shape_cast %77 : vector<8x128xf32> to vector<1x8x128xf32>
    tpu.vector_store %arg8[%78, %c0_39, %c0_40], %81 {strides = array<i32>} : memref<8x8x128xf32, #tpu.memory_space<vmem>>, vector<1x8x128xf32>,
    %c8_i32 = arith.constant 8 : i32
    %c0_41 = arith.constant 0 : index
    %c0_42 = arith.constant 0 : index
    %82 = vector.load %arg9[%c0_41, %c0_42] : memref<8x128xf32, #tpu.memory_space<vmem>>, vector<8x128xf32>
    tpu.vector_store %arg9[%c0_41, %c0_42], %77 {strides = array<i32>} : memref<8x128xf32, #tpu.memory_space<vmem>>, vector<8x128xf32>,
    %c0_43 = arith.constant 0 : index
    %c0_44 = arith.constant 0 : index
    %83 = vector.load %arg2[%c0_43, %c0_44] : memref<8x16xf32, #tpu.memory_space<vmem>>, vector<8x16xf32>
    %c0_45 = arith.constant 0 : index
    %c0_46 = arith.constant 0 : index
    %84 = vector.load %arg3[%c0_45, %c0_46] : memref<16x16xf32, #tpu.memory_space<vmem>>, vector<16x16xf32>
    %cst_47 = arith.constant dense<0.000000e+00> : vector<8x16xf32>
    %85 = tpu.matmul %83, %84, %cst_47 {dimension_numbers = #tpu.dot_dimension_numbers<[1], [0], [0], [1], [0, 0, 1, 1], [], []>} : vector<8x16xf32>, vector<16x16xf32>, vector<8x16xf32> -> vector<8x16xf32>
    %c0_48 = arith.constant 0 : index
    %c0_49 = arith.constant 0 : index
    %86 = vector.load %arg4[%c0_48, %c0_49] : memref<1x16xf32, #tpu.memory_space<vmem>>, vector<1x16xf32>
    %87 = vector.broadcast %86 : vector<1x16xf32> to vector<8x16xf32>
    %88 = arith.addf %85, %87 : vector<8x16xf32>
    %89 = math.tanh %88 : vector<8x16xf32>
    %c0_50 = arith.constant 0 : index
    %c0_51 = arith.constant 0 : index
    %90 = vector.load %arg5[%c0_50, %c0_51] : memref<128x128xf32, #tpu.memory_space<vmem>>, vector<128x128xf32>
    %cst_52 = arith.constant dense<0.000000e+00> : vector<8x128xf32>
    %91 = tpu.matmul %77, %90, %cst_52 {dimension_numbers = #tpu.dot_dimension_numbers<[1], [0], [0], [1], [0, 0, 1, 1], [], []>} : vector<8x128xf32>, vector<128x128xf32>, vector<8x128xf32> -> vector<8x128xf32>
    %c0_53 = arith.constant 0 : index
    %c0_54 = arith.constant 0 : index
    %92 = vector.load %arg6[%c0_53, %c0_54] : memref<16x128xf32, #tpu.memory_space<vmem>>, vector<16x128xf32>
    %cst_55 = arith.constant dense<0.000000e+00> : vector<8x128xf32>
    %93 = tpu.matmul %89, %92, %cst_55 {dimension_numbers = #tpu.dot_dimension_numbers<[1], [0], [0], [1], [0, 0, 1, 1], [], []>} : vector<8x16xf32>, vector<16x128xf32>, vector<8x128xf32> -> vector<8x128xf32>
    %94 = arith.addf %91, %93 : vector<8x128xf32>
    %c0_56 = arith.constant 0 : index
    %c0_57 = arith.constant 0 : index
    %95 = vector.load %arg7[%c0_56, %c0_57] : memref<1x128xf32, #tpu.memory_space<vmem>>, vector<1x128xf32>
    %96 = vector.broadcast %95 : vector<1x128xf32> to vector<8x128xf32>
    %97 = arith.addf %94, %96 : vector<8x128xf32>
    %98 = math.tanh %97 : vector<8x128xf32>
    %c0_58 = arith.constant 0 : index
    %c0_59 = arith.constant 0 : index
    %99 = vector.load %arg10[%c0_58, %c0_59] : memref<8x128xf32, #tpu.memory_space<vmem>>, vector<8x128xf32>
    tpu.vector_store %arg10[%c0_58, %c0_59], %98 {strides = array<i32>} : memref<8x128xf32, #tpu.memory_space<vmem>>, vector<8x128xf32>,
    return
  }
}

</mosaic_0001>

<llo_original>
// kernel: tpu_custom_call.1
$region0: #{tpu_custom_call.1}
  #allocation0 [shape = 'u32[]', space=smem, size = 0x4, offset = 0x4, fixed_abs, tag = 'smem constant byte address 0x4 - core index']
  #allocation1 [shape = 'u32[144,128]{1,0:T(1,128)}', space=vmem, size = 0x12000, scoped, tag = 'internal scratch']
  %s0 = inlined_call_operand.hbm [shape: f32[8,8,128], index: 0, kind: input, shape index: {}]
  %s1 = inlined_call_operand.hbm [shape: f32[128,128], index: 1, kind: input, shape index: {}]
  %s2 = inlined_call_operand.hbm [shape: f32[8,16], index: 2, kind: input, shape index: {}]
  %s3 = inlined_call_operand.hbm [shape: f32[16,16], index: 3, kind: input, shape index: {}]
  %s4 = inlined_call_operand.vmem [shape: f32[1,16], index: 4, kind: input, shape index: {}]
  %s5 = inlined_call_operand.hbm [shape: f32[128,128], index: 5, kind: input, shape index: {}]
  %s6 = inlined_call_operand.hbm [shape: f32[16,128], index: 6, kind: input, shape index: {}]
  %s7 = inlined_call_operand.vmem [shape: f32[1,128], index: 7, kind: input, shape index: {}]
  %s8 = inlined_call_operand.hbm [shape: f32[8,8,128], index: 8, kind: output, shape index: {0}]
  %s9 = inlined_call_operand.hbm [shape: f32[8,128], index: 9, kind: output, shape index: {1}]
  %s10 = inlined_call_operand.hbm [shape: f32[8,128], index: 10, kind: output, shape index: {2}]
  %11 = xla_tuple %s8, %s9, %s10
  %s12 = sld [smem:[#allocation0]]
  $region82: #{tpu_custom_call.1} parent=0
    _
  %s14 = ssub.s32 1, %s12
  %s15 = scalar_select 0, %s14, %s12
  $region1: #{tpu_custom_call.1} parent=0
    #allocation2 [shape = 'u8[32768]{0}', space=vmem, size = 0x8000, scoped, tag = 'input window, operand 0, single buffered']
    #allocation3 [shape = 's32[1]{0}', space=sflag, size = 0x4, scoped, tag = 'scoped memory for tpu_custom_call.1']
    #allocation4 [shape = 's32[1]{0}', space=sflag, size = 0x4, scoped, tag = 'scoped memory for tpu_custom_call.1']
    #allocation5 [shape = 'u8[65536]{0}', space=vmem, size = 0x10000, scoped, tag = 'input window, operand 1, single buffered']
    #allocation6 [shape = 's32[1]{0}', space=sflag, size = 0x4, scoped, tag = 'scoped memory for tpu_custom_call.1']
    #allocation7 [shape = 'u8[4096]{0}', space=vmem, size = 0x1000, scoped, tag = 'input window, operand 2, single buffered']
    #allocation8 [shape = 'u8[8192]{0}', space=vmem, size = 0x2000, scoped, tag = 'input window, operand 3, single buffered']
    #allocation9 [shape = 's32[1]{0}', space=sflag, size = 0x4, scoped, tag = 'scoped memory for tpu_custom_call.1']
    #allocation10 [shape = 'u8[65536]{0}', space=vmem, size = 0x10000, scoped, tag = 'input window, operand 5, single buffered']
    #allocation11 [shape = 'u8[8192]{0}', space=vmem, size = 0x2000, scoped, tag = 'input window, operand 6, single buffered']
    #allocation12 [shape = 's32[1]{0}', space=sflag, size = 0x4, scoped, tag = 'scoped memory for tpu_custom_call.1']
    #allocation13 [shape = 'u8[32768]{0}', space=vmem, size = 0x8000, scoped, tag = 'output window, operand 0, single buffered']
    #allocation14 [shape = 'u8[4096]{0}', space=vmem, size = 0x1000, scoped, tag = 'output window, operand 1, single buffered']
    #allocation15 [shape = 's32[1]{0}', space=sflag, size = 0x4, scoped, tag = 'scoped memory for tpu_custom_call.1']
    #allocation16 [shape = 'u8[4096]{0}', space=vmem, size = 0x1000, scoped, tag = 'output window, operand 2, single buffered']
    %16 = vsyncpa [#allocation3], 0
    %17 = vsyncpa [#allocation6], 0
    %18 = vsyncpa [#allocation9], 0
    %19 = vsyncpa [#allocation12], 0
    %20 = vsyncpa [#allocation4], 0
    %21 = vsyncpa [#allocation15], 0
    // Predicated region
    $region2: #{tpu_custom_call.1} parent=1 // pred_check
      _
    $region3: #{tpu_custom_call.1} parent=1 // pred_check_branch
      %23 = sbr.rel (0) target = $region5
    $region4: #{tpu_custom_call.1} parent=1 // pred_region
      %s25 = ssub.s32 1024, 1024
      %26 = vsyncadd [#allocation3], %s25
      %s27 = sshll.u32 [#allocation2], 4
      %s28 = int_to_ptr.vmem [resolvable:$true] %s27
      %33 = dma.hbm_to_vmem [thread:$0]  %s0, 1024, %s28, [#allocation3], 128, 128, 8
    $region5: #{tpu_custom_call.1} parent=1 // pred_fallthru
      _
    // Predicated region
    $region6: #{tpu_custom_call.1} parent=1 // pred_check
      _
    $region7: #{tpu_custom_call.1} parent=1 // pred_check_branch
      %35 = sbr.rel (0) target = $region9
    $region8: #{tpu_custom_call.1} parent=1 // pred_region
      %s37 = ssub.s32 2048, 2048
      %38 = vsyncadd [#allocation6], %s37
      %s39 = sshll.u32 [#allocation5], 4
      %s40 = int_to_ptr.vmem [resolvable:$true] %s39
      %45 = dma.hbm_to_vmem [thread:$0]  %s1, 2048, %s40, [#allocation6], 128, 128, 8
    $region9: #{tpu_custom_call.1} parent=1 // pred_fallthru
      _
    // Predicated region
    $region10: #{tpu_custom_call.1} parent=1 // pred_check
      _
    $region11: #{tpu_custom_call.1} parent=1 // pred_check_branch
      %47 = sbr.rel (0) target = $region13
    $region12: #{tpu_custom_call.1} parent=1 // pred_region
      %s49 = ssub.s32 128, 128
      %50 = vsyncadd [#allocation6], %s49
      %s52 = sshll.u32 [#allocation7], 4
      %s53 = int_to_ptr.vmem [resolvable:$true] %s52
      %55 = dma.hbm_to_vmem [thread:$0]  %s2, 128, %s53, [#allocation6]
    $region13: #{tpu_custom_call.1} parent=1 // pred_fallthru
      _
    // Predicated region
    $region14: #{tpu_custom_call.1} parent=1 // pred_check
      _
    $region15: #{tpu_custom_call.1} parent=1 // pred_check_branch
      %57 = sbr.rel (0) target = $region17
    $region16: #{tpu_custom_call.1} parent=1 // pred_region
      %s59 = ssub.s32 256, 256
      %60 = vsyncadd [#allocation9], %s59
      %s61 = sshll.u32 [#allocation8], 4
      %s62 = int_to_ptr.vmem [resolvable:$true] %s61
      %67 = dma.hbm_to_vmem [thread:$0]  %s3, 256, %s62, [#allocation9], 128, 128, 8
    $region17: #{tpu_custom_call.1} parent=1 // pred_fallthru
      _
    // Predicated region
    $region18: #{tpu_custom_call.1} parent=1 // pred_check
      _
    $region19: #{tpu_custom_call.1} parent=1 // pred_check_branch
      %69 = sbr.rel (0) target = $region21
    $region20: #{tpu_custom_call.1} parent=1 // pred_region
      _
    $region21: #{tpu_custom_call.1} parent=1 // pred_fallthru
      _
    // Predicated region
    $region22: #{tpu_custom_call.1} parent=1 // pred_check
      _
    $region23: #{tpu_custom_call.1} parent=1 // pred_check_branch
      %71 = sbr.rel (0) target = $region25
    $region24: #{tpu_custom_call.1} parent=1 // pred_region
      %s73 = ssub.s32 2048, 2048
      %74 = vsyncadd [#allocation9], %s73
      %s75 = sshll.u32 [#allocation10], 4
      %s76 = int_to_ptr.vmem [resolvable:$true] %s75
      %81 = dma.hbm_to_vmem [thread:$0]  %s5, 2048, %s76, [#allocation9], 128, 128, 8
    $region25: #{tpu_custom_call.1} parent=1 // pred_fallthru
      _
    // Predicated region
    $region26: #{tpu_custom_call.1} parent=1 // pred_check
      _
    $region27: #{tpu_custom_call.1} parent=1 // pred_check_branch
      %83 = sbr.rel (0) target = $region29
    $region28: #{tpu_custom_call.1} parent=1 // pred_region
      %s85 = ssub.s32 256, 256
      %86 = vsyncadd [#allocation12], %s85
      %s87 = sshll.u32 [#allocation11], 4
      %s88 = int_to_ptr.vmem [resolvable:$true] %s87
      %93 = dma.hbm_to_vmem [thread:$0]  %s6, 256, %s88, [#allocation12], 128, 128, 8
    $region29: #{tpu_custom_call.1} parent=1 // pred_fallthru
      _
    // Predicated region
    $region30: #{tpu_custom_call.1} parent=1 // pred_check
      _
    $region31: #{tpu_custom_call.1} parent=1 // pred_check_branch
      %95 = sbr.rel (0) target = $region33
    $region32: #{tpu_custom_call.1} parent=1 // pred_region
      _
    $region33: #{tpu_custom_call.1} parent=1 // pred_fallthru
      _
    // Predicated region
    $region34: #{tpu_custom_call.1} parent=1 // pred_check
      _
    $region35: #{tpu_custom_call.1} parent=1 // pred_check_branch
      %97 = sbr.rel (0) target = $region37
    $region36: #{tpu_custom_call.1} parent=1 // pred_region
      %98 = dma.done [#allocation3], 1024
    $region37: #{tpu_custom_call.1} parent=1 // pred_fallthru
      _
    // Predicated region
    $region38: #{tpu_custom_call.1} parent=1 // pred_check
      _
    $region39: #{tpu_custom_call.1} parent=1 // pred_check_branch
      %100 = sbr.rel (0) target = $region41
    $region40: #{tpu_custom_call.1} parent=1 // pred_region
      %101 = dma.done [#allocation6], 2048
    $region41: #{tpu_custom_call.1} parent=1 // pred_fallthru
      _
    // Predicated region
    $region42: #{tpu_custom_call.1} parent=1 // pred_check
      _
    $region43: #{tpu_custom_call.1} parent=1 // pred_check_branch
      %103 = sbr.rel (0) target = $region45
    $region44: #{tpu_custom_call.1} parent=1 // pred_region
      %104 = dma.done [#allocation6], 128
    $region45: #{tpu_custom_call.1} parent=1 // pred_fallthru
      _
    // Predicated region
    $region46: #{tpu_custom_call.1} parent=1 // pred_check
      _
    $region47: #{tpu_custom_call.1} parent=1 // pred_check_branch
      %106 = sbr.rel (0) target = $region49
    $region48: #{tpu_custom_call.1} parent=1 // pred_region
      %107 = dma.done [#allocation9], 256
    $region49: #{tpu_custom_call.1} parent=1 // pred_fallthru
      _
    // Predicated region
    $region50: #{tpu_custom_call.1} parent=1 // pred_check
      _
    $region51: #{tpu_custom_call.1} parent=1 // pred_check_branch
      %109 = sbr.rel (0) target = $region53
    $region52: #{tpu_custom_call.1} parent=1 // pred_region
      %110 = dma.done [#allocation9], 2048
    $region53: #{tpu_custom_call.1} parent=1 // pred_fallthru
      _
    // Predicated region
    $region54: #{tpu_custom_call.1} parent=1 // pred_check
      _
    $region55: #{tpu_custom_call.1} parent=1 // pred_check_branch
      %112 = sbr.rel (0) target = $region57
    $region56: #{tpu_custom_call.1} parent=1 // pred_region
      %113 = dma.done [#allocation12], 256
    $region57: #{tpu_custom_call.1} parent=1 // pred_fallthru
      _
    %v114 = vld [vmem:[#allocation5] sm:$0xff]
    %v115 = vld [vmem:[#allocation5 + $0x8] sm:$0xff]
    %v116 = vld [vmem:[#allocation5 + $0x10] sm:$0xff]
    %v117 = vld [vmem:[#allocation5 + $0x18] sm:$0xff]
    %v118 = vld [vmem:[#allocation5 + $0x20] sm:$0xff]
    %v119 = vld [vmem:[#allocation5 + $0x28] sm:$0xff]
    %v120 = vld [vmem:[#allocation5 + $0x30] sm:$0xff]
    %v121 = vld [vmem:[#allocation5 + $0x38] sm:$0xff]
    %v122 = vld [vmem:[#allocation5 + $0x40] sm:$0xff]
    %v123 = vld [vmem:[#allocation5 + $0x48] sm:$0xff]
    %v124 = vld [vmem:[#allocation5 + $0x50] sm:$0xff]
    %v125 = vld [vmem:[#allocation5 + $0x58] sm:$0xff]
    %v126 = vld [vmem:[#allocation5 + $0x60] sm:$0xff]
    %v127 = vld [vmem:[#allocation5 + $0x68] sm:$0xff]
    %v128 = vld [vmem:[#allocation5 + $0x70] sm:$0xff]
    %v129 = vld [vmem:[#allocation5 + $0x78] sm:$0xff]
    %v130 = vld [vmem:[#allocation2] sm:$0xff]
    %131 = vmatprep.subr.mxu0 0.0
    %132 = vmatpush1.msra.mxu0 %v129
    %133 = vmatprep.subr.mxu0 0.0
    %134 = vmatpush1.msra.mxu0 %v128
    %135 = vmatprep.subr.mxu0 0.0
    %136 = vmatpush1.msra.mxu0 %v127
    %137 = vmatprep.subr.mxu0 0.0
    %138 = vmatpush1.msra.mxu0 %v126
    %139 = vmatprep.subr.mxu0 0.0
    %140 = vmatpush1.msra.mxu0 %v125
    %141 = vmatprep.subr.mxu0 0.0
    %142 = vmatpush1.msra.mxu0 %v124
    %143 = vmatprep.subr.mxu0 0.0
    %144 = vmatpush1.msra.mxu0 %v123
    %145 = vmatprep.subr.mxu0 0.0
    %146 = vmatpush1.msra.mxu0 %v122
    %147 = vmatprep.subr.mxu0 0.0
    %148 = vmatpush1.msra.mxu0 %v121
    %149 = vmatprep.subr.mxu0 0.0
    %150 = vmatpush1.msra.mxu0 %v120
    %151 = vmatprep.subr.mxu0 0.0
    %152 = vmatpush1.msra.mxu0 %v119
    %153 = vmatprep.subr.mxu0 0.0
    %154 = vmatpush1.msra.mxu0 %v118
    %155 = vmatprep.subr.mxu0 0.0
    %156 = vmatpush1.msra.mxu0 %v117
    %157 = vmatprep.subr.mxu0 0.0
    %158 = vmatpush1.msra.mxu0 %v116
    %159 = vmatprep.subr.mxu0 0.0
    %160 = vmatpush1.msra.mxu0 %v115
    %161 = vmatprep.subr.mxu0 0.0
    %162 = vmatpush1.msra.mxu0 %v114
    %163 = vmatprep.subr.mxu0 0.0
    %164 = vmatpush2.msra.mxu0 0.0
    %165 = vmatprep.subr.mxu0 0.0
    %166 = vmatpush2.msra.mxu0 0.0
    %167 = vmatprep.subr.mxu0 0.0
    %168 = vmatpush2.msra.mxu0 0.0
    %169 = vmatprep.subr.mxu0 0.0
    %170 = vmatpush2.msra.mxu0 0.0
    %171 = vmatprep.subr.mxu0 0.0
    %172 = vmatpush2.msra.mxu0 0.0
    %173 = vmatprep.subr.mxu0 0.0
    %174 = vmatpush2.msra.mxu0 0.0
    %175 = vmatprep.subr.mxu0 0.0
    %176 = vmatpush2.msra.mxu0 0.0
    %177 = vmatprep.subr.mxu0 0.0
    %178 = vmatpush2.msra.mxu0 0.0
    %179 = vmatprep.subr.mxu0 0.0
    %180 = vmatpush2.msra.mxu0 0.0
    %181 = vmatprep.subr.mxu0 0.0
    %182 = vmatpush2.msra.mxu0 0.0
    %183 = vmatprep.subr.mxu0 0.0
    %184 = vmatpush2.msra.mxu0 0.0
    %185 = vmatprep.subr.mxu0 0.0
    %186 = vmatpush2.msra.mxu0 0.0
    %187 = vmatprep.subr.mxu0 0.0
    %188 = vmatpush2.msra.mxu0 0.0
    %189 = vmatprep.subr.mxu0 0.0
    %190 = vmatpush2.msra.mxu0 0.0
    %191 = vmatprep.subr.mxu0 0.0
    %192 = vmatpush2.msra.mxu0 0.0
    %193 = vmatprep.subr.mxu0 0.0
    %194 = vmatpush2.msra.mxu0 0.0
    %195 = vmatprep.mubr.f32.mxu0 0.0
    %196 = vmatmul.mubr.f32.gmra.mxu0 0.0
    %v197 = vpop.f32.mrf.mxu0
    %v198 = vadd.f32 0.0, %v197
    %v199 = vpop.f32.mrf.mxu0
    %200 = vdwg.mxu0
    %v201 = vadd.f32 %v130, %v198
    %v202 = vtanh.pop %v201
    %203 = vst [vmem:[#allocation13] sm:$0xff] %v202
    %s204 = scalar_lea.vmem [#allocation2], 8
    %v205 = vld [vmem:[%s204] sm:$0xff]
    %206 = vmatprep.subr.mxu0 0.0
    %207 = vmatpush1.msra.mxu0 %v129
    %208 = vmatprep.subr.mxu0 0.0
    %209 = vmatpush1.msra.mxu0 %v128
    %210 = vmatprep.subr.mxu0 0.0
    %211 = vmatpush1.msra.mxu0 %v127
    %212 = vmatprep.subr.mxu0 0.0
    %213 = vmatpush1.msra.mxu0 %v126
    %214 = vmatprep.subr.mxu0 0.0
    %215 = vmatpush1.msra.mxu0 %v125
    %216 = vmatprep.subr.mxu0 0.0
    %217 = vmatpush1.msra.mxu0 %v124
    %218 = vmatprep.subr.mxu0 0.0
    %219 = vmatpush1.msra.mxu0 %v123
    %220 = vmatprep.subr.mxu0 0.0
    %221 = vmatpush1.msra.mxu0 %v122
    %222 = vmatprep.subr.mxu0 0.0
    %223 = vmatpush1.msra.mxu0 %v121
    %224 = vmatprep.subr.mxu0 0.0
    %225 = vmatpush1.msra.mxu0 %v120
    %226 = vmatprep.subr.mxu0 0.0
    %227 = vmatpush1.msra.mxu0 %v119
    %228 = vmatprep.subr.mxu0 0.0
    %229 = vmatpush1.msra.mxu0 %v118
    %230 = vmatprep.subr.mxu0 0.0
    %231 = vmatpush1.msra.mxu0 %v117
    %232 = vmatprep.subr.mxu0 0.0
    %233 = vmatpush1.msra.mxu0 %v116
    %234 = vmatprep.subr.mxu0 0.0
    %235 = vmatpush1.msra.mxu0 %v115
    %236 = vmatprep.subr.mxu0 0.0
    %237 = vmatpush1.msra.mxu0 %v114
    %238 = vmatprep.subr.mxu0 0.0
    %239 = vmatpush2.msra.mxu0 0.0
    %240 = vmatprep.subr.mxu0 0.0
    %241 = vmatpush2.msra.mxu0 0.0
    %242 = vmatprep.subr.mxu0 0.0
    %243 = vmatpush2.msra.mxu0 0.0
    %244 = vmatprep.subr.mxu0 0.0
    %245 = vmatpush2.msra.mxu0 0.0
    %246 = vmatprep.subr.mxu0 0.0
    %247 = vmatpush2.msra.mxu0 0.0
    %248 = vmatprep.subr.mxu0 0.0
    %249 = vmatpush2.msra.mxu0 0.0
    %250 = vmatprep.subr.mxu0 0.0
    %251 = vmatpush2.msra.mxu0 0.0
    %252 = vmatprep.subr.mxu0 0.0
    %253 = vmatpush2.msra.mxu0 0.0
    %254 = vmatprep.subr.mxu0 0.0
    %255 = vmatpush2.msra.mxu0 0.0
    %256 = vmatprep.subr.mxu0 0.0
    %257 = vmatpush2.msra.mxu0 0.0
    %258 = vmatprep.subr.mxu0 0.0
    %259 = vmatpush2.msra.mxu0 0.0
    %260 = vmatprep.subr.mxu0 0.0
    %261 = vmatpush2.msra.mxu0 0.0
    %262 = vmatprep.subr.mxu0 0.0
    %263 = vmatpush2.msra.mxu0 0.0
    %264 = vmatprep.subr.mxu0 0.0
    %265 = vmatpush2.msra.mxu0 0.0
    %266 = vmatprep.subr.mxu0 0.0
    %267 = vmatpush2.msra.mxu0 0.0
    %268 = vmatprep.subr.mxu0 0.0
    %269 = vmatpush2.msra.mxu0 0.0
    %270 = vmatprep.mubr.f32.mxu0 0.0
    %271 = vmatmul.mubr.f32.gmra.mxu0 %v202
    %v272 = vpop.f32.mrf.mxu0
    %v273 = vadd.f32 0.0, %v272
    %v274 = vpop.f32.mrf.mxu0
    %275 = vdwg.mxu0
    %v276 = vadd.f32 %v205, %v273
    %v277 = vtanh.pop %v276
    %s278 = scalar_lea.vmem [#allocation13], 8
    %279 = vst [vmem:[%s278] sm:$0xff] %v277
    %s280 = scalar_lea.vmem [#allocation2], 16
    %v281 = vld [vmem:[%s280] sm:$0xff]
    %282 = vmatprep.subr.mxu0 0.0
    %283 = vmatpush1.msra.mxu0 %v129
    %284 = vmatprep.subr.mxu0 0.0
    %285 = vmatpush1.msra.mxu0 %v128
    %286 = vmatprep.subr.mxu0 0.0
    %287 = vmatpush1.msra.mxu0 %v127
    %288 = vmatprep.subr.mxu0 0.0
    %289 = vmatpush1.msra.mxu0 %v126
    %290 = vmatprep.subr.mxu0 0.0
    %291 = vmatpush1.msra.mxu0 %v125
    %292 = vmatprep.subr.mxu0 0.0
    %293 = vmatpush1.msra.mxu0 %v124
    %294 = vmatprep.subr.mxu0 0.0
    %295 = vmatpush1.msra.mxu0 %v123
    %296 = vmatprep.subr.mxu0 0.0
    %297 = vmatpush1.msra.mxu0 %v122
    %298 = vmatprep.subr.mxu0 0.0
    %299 = vmatpush1.msra.mxu0 %v121
    %300 = vmatprep.subr.mxu0 0.0
    %301 = vmatpush1.msra.mxu0 %v120
    %302 = vmatprep.subr.mxu0 0.0
    %303 = vmatpush1.msra.mxu0 %v119
    %304 = vmatprep.subr.mxu0 0.0
    %305 = vmatpush1.msra.mxu0 %v118
    %306 = vmatprep.subr.mxu0 0.0
    %307 = vmatpush1.msra.mxu0 %v117
    %308 = vmatprep.subr.mxu0 0.0
    %309 = vmatpush1.msra.mxu0 %v116
    %310 = vmatprep.subr.mxu0 0.0
    %311 = vmatpush1.msra.mxu0 %v115
    %312 = vmatprep.subr.mxu0 0.0
    %313 = vmatpush1.msra.mxu0 %v114
    %314 = vmatprep.subr.mxu0 0.0
    %315 = vmatpush2.msra.mxu0 0.0
    %316 = vmatprep.subr.mxu0 0.0
    %317 = vmatpush2.msra.mxu0 0.0
    %318 = vmatprep.subr.mxu0 0.0
    %319 = vmatpush2.msra.mxu0 0.0
    %320 = vmatprep.subr.mxu0 0.0
    %321 = vmatpush2.msra.mxu0 0.0
    %322 = vmatprep.subr.mxu0 0.0
    %323 = vmatpush2.msra.mxu0 0.0
    %324 = vmatprep.subr.mxu0 0.0
    %325 = vmatpush2.msra.mxu0 0.0
    %326 = vmatprep.subr.mxu0 0.0
    %327 = vmatpush2.msra.mxu0 0.0
    %328 = vmatprep.subr.mxu0 0.0
    %329 = vmatpush2.msra.mxu0 0.0
    %330 = vmatprep.subr.mxu0 0.0
    %331 = vmatpush2.msra.mxu0 0.0
    %332 = vmatprep.subr.mxu0 0.0
    %333 = vmatpush2.msra.mxu0 0.0
    %334 = vmatprep.subr.mxu0 0.0
    %335 = vmatpush2.msra.mxu0 0.0
    %336 = vmatprep.subr.mxu0 0.0
    %337 = vmatpush2.msra.mxu0 0.0
    %338 = vmatprep.subr.mxu0 0.0
    %339 = vmatpush2.msra.mxu0 0.0
    %340 = vmatprep.subr.mxu0 0.0
    %341 = vmatpush2.msra.mxu0 0.0
    %342 = vmatprep.subr.mxu0 0.0
    %343 = vmatpush2.msra.mxu0 0.0
    %344 = vmatprep.subr.mxu0 0.0
    %345 = vmatpush2.msra.mxu0 0.0
    %346 = vmatprep.mubr.f32.mxu0 0.0
    %347 = vmatmul.mubr.f32.gmra.mxu0 %v277
    %v348 = vpop.f32.mrf.mxu0
    %v349 = vadd.f32 0.0, %v348
    %v350 = vpop.f32.mrf.mxu0
    %351 = vdwg.mxu0
    %v352 = vadd.f32 %v281, %v349
    %v353 = vtanh.pop %v352
    %s354 = scalar_lea.vmem [#allocation13], 16
    %355 = vst [vmem:[%s354] sm:$0xff] %v353
    %s356 = scalar_lea.vmem [#allocation2], 24
    %v357 = vld [vmem:[%s356] sm:$0xff]
    %358 = vmatprep.subr.mxu0 0.0
    %359 = vmatpush1.msra.mxu0 %v129
    %360 = vmatprep.subr.mxu0 0.0
    %361 = vmatpush1.msra.mxu0 %v128
    %362 = vmatprep.subr.mxu0 0.0
    %363 = vmatpush1.msra.mxu0 %v127
    %364 = vmatprep.subr.mxu0 0.0
    %365 = vmatpush1.msra.mxu0 %v126
    %366 = vmatprep.subr.mxu0 0.0
    %367 = vmatpush1.msra.mxu0 %v125
    %368 = vmatprep.subr.mxu0 0.0
    %369 = vmatpush1.msra.mxu0 %v124
    %370 = vmatprep.subr.mxu0 0.0
    %371 = vmatpush1.msra.mxu0 %v123
    %372 = vmatprep.subr.mxu0 0.0
    %373 = vmatpush1.msra.mxu0 %v122
    %374 = vmatprep.subr.mxu0 0.0
    %375 = vmatpush1.msra.mxu0 %v121
    %376 = vmatprep.subr.mxu0 0.0
    %377 = vmatpush1.msra.mxu0 %v120
    %378 = vmatprep.subr.mxu0 0.0
    %379 = vmatpush1.msra.mxu0 %v119
    %380 = vmatprep.subr.mxu0 0.0
    %381 = vmatpush1.msra.mxu0 %v118
    %382 = vmatprep.subr.mxu0 0.0
    %383 = vmatpush1.msra.mxu0 %v117
    %384 = vmatprep.subr.mxu0 0.0
    %385 = vmatpush1.msra.mxu0 %v116
    %386 = vmatprep.subr.mxu0 0.0
    %387 = vmatpush1.msra.mxu0 %v115
    %388 = vmatprep.subr.mxu0 0.0
    %389 = vmatpush1.msra.mxu0 %v114
    %390 = vmatprep.subr.mxu0 0.0
    %391 = vmatpush2.msra.mxu0 0.0
    %392 = vmatprep.subr.mxu0 0.0
    %393 = vmatpush2.msra.mxu0 0.0
    %394 = vmatprep.subr.mxu0 0.0
    %395 = vmatpush2.msra.mxu0 0.0
    %396 = vmatprep.subr.mxu0 0.0
    %397 = vmatpush2.msra.mxu0 0.0
    %398 = vmatprep.subr.mxu0 0.0
    %399 = vmatpush2.msra.mxu0 0.0
    %400 = vmatprep.subr.mxu0 0.0
    %401 = vmatpush2.msra.mxu0 0.0
    %402 = vmatprep.subr.mxu0 0.0
    %403 = vmatpush2.msra.mxu0 0.0
    %404 = vmatprep.subr.mxu0 0.0
    %405 = vmatpush2.msra.mxu0 0.0
    %406 = vmatprep.subr.mxu0 0.0
    %407 = vmatpush2.msra.mxu0 0.0
    %408 = vmatprep.subr.mxu0 0.0
    %409 = vmatpush2.msra.mxu0 0.0
    %410 = vmatprep.subr.mxu0 0.0
    %411 = vmatpush2.msra.mxu0 0.0
    %412 = vmatprep.subr.mxu0 0.0
    %413 = vmatpush2.msra.mxu0 0.0
    %414 = vmatprep.subr.mxu0 0.0
    %415 = vmatpush2.msra.mxu0 0.0
    %416 = vmatprep.subr.mxu0 0.0
    %417 = vmatpush2.msra.mxu0 0.0
    %418 = vmatprep.subr.mxu0 0.0
    %419 = vmatpush2.msra.mxu0 0.0
    %420 = vmatprep.subr.mxu0 0.0
    %421 = vmatpush2.msra.mxu0 0.0
    %422 = vmatprep.mubr.f32.mxu0 0.0
    %423 = vmatmul.mubr.f32.gmra.mxu0 %v353
    %v424 = vpop.f32.mrf.mxu0
    %v425 = vadd.f32 0.0, %v424
    %v426 = vpop.f32.mrf.mxu0
    %427 = vdwg.mxu0
    %v428 = vadd.f32 %v357, %v425
    %v429 = vtanh.pop %v428
    %s430 = scalar_lea.vmem [#allocation13], 24
    %431 = vst [vmem:[%s430] sm:$0xff] %v429
    %s432 = scalar_lea.vmem [#allocation2], 32
    %v433 = vld [vmem:[%s432] sm:$0xff]
    %434 = vmatprep.subr.mxu0 0.0
    %435 = vmatpush1.msra.mxu0 %v129
    %436 = vmatprep.subr.mxu0 0.0
    %437 = vmatpush1.msra.mxu0 %v128
    %438 = vmatprep.subr.mxu0 0.0
    %439 = vmatpush1.msra.mxu0 %v127
    %440 = vmatprep.subr.mxu0 0.0
    %441 = vmatpush1.msra.mxu0 %v126
    %442 = vmatprep.subr.mxu0 0.0
    %443 = vmatpush1.msra.mxu0 %v125
    %444 = vmatprep.subr.mxu0 0.0
    %445 = vmatpush1.msra.mxu0 %v124
    %446 = vmatprep.subr.mxu0 0.0
    %447 = vmatpush1.msra.mxu0 %v123
    %448 = vmatprep.subr.mxu0 0.0
    %449 = vmatpush1.msra.mxu0 %v122
    %450 = vmatprep.subr.mxu0 0.0
    %451 = vmatpush1.msra.mxu0 %v121
    %452 = vmatprep.subr.mxu0 0.0
    %453 = vmatpush1.msra.mxu0 %v120
    %454 = vmatprep.subr.mxu0 0.0
    %455 = vmatpush1.msra.mxu0 %v119
    %456 = vmatprep.subr.mxu0 0.0
    %457 = vmatpush1.msra.mxu0 %v118
    %458 = vmatprep.subr.mxu0 0.0
    %459 = vmatpush1.msra.mxu0 %v117
    %460 = vmatprep.subr.mxu0 0.0
    %461 = vmatpush1.msra.mxu0 %v116
    %462 = vmatprep.subr.mxu0 0.0
    %463 = vmatpush1.msra.mxu0 %v115
    %464 = vmatprep.subr.mxu0 0.0
    %465 = vmatpush1.msra.mxu0 %v114
    %466 = vmatprep.subr.mxu0 0.0
    %467 = vmatpush2.msra.mxu0 0.0
    %468 = vmatprep.subr.mxu0 0.0
    %469 = vmatpush2.msra.mxu0 0.0
    %470 = vmatprep.subr.mxu0 0.0
    %471 = vmatpush2.msra.mxu0 0.0
    %472 = vmatprep.subr.mxu0 0.0
    %473 = vmatpush2.msra.mxu0 0.0
    %474 = vmatprep.subr.mxu0 0.0
    %475 = vmatpush2.msra.mxu0 0.0
    %476 = vmatprep.subr.mxu0 0.0
    %477 = vmatpush2.msra.mxu0 0.0
    %478 = vmatprep.subr.mxu0 0.0
    %479 = vmatpush2.msra.mxu0 0.0
    %480 = vmatprep.subr.mxu0 0.0
    %481 = vmatpush2.msra.mxu0 0.0
    %482 = vmatprep.subr.mxu0 0.0
    %483 = vmatpush2.msra.mxu0 0.0
    %484 = vmatprep.subr.mxu0 0.0
    %485 = vmatpush2.msra.mxu0 0.0
    %486 = vmatprep.subr.mxu0 0.0
    %487 = vmatpush2.msra.mxu0 0.0
    %488 = vmatprep.subr.mxu0 0.0
    %489 = vmatpush2.msra.mxu0 0.0
    %490 = vmatprep.subr.mxu0 0.0
    %491 = vmatpush2.msra.mxu0 0.0
    %492 = vmatprep.subr.mxu0 0.0
    %493 = vmatpush2.msra.mxu0 0.0
    %494 = vmatprep.subr.mxu0 0.0
    %495 = vmatpush2.msra.mxu0 0.0
    %496 = vmatprep.subr.mxu0 0.0
    %497 = vmatpush2.msra.mxu0 0.0
    %498 = vmatprep.mubr.f32.mxu0 0.0
    %499 = vmatmul.mubr.f32.gmra.mxu0 %v429
    %v500 = vpop.f32.mrf.mxu0
    %v501 = vadd.f32 0.0, %v500
    %v502 = vpop.f32.mrf.mxu0
    %503 = vdwg.mxu0
    %v504 = vadd.f32 %v433, %v501
    %v505 = vtanh.pop %v504
    %s506 = scalar_lea.vmem [#allocation13], 32
    %507 = vst [vmem:[%s506] sm:$0xff] %v505
    %s508 = scalar_lea.vmem [#allocation2], 40
    %v509 = vld [vmem:[%s508] sm:$0xff]
    %510 = vmatprep.subr.mxu0 0.0
    %511 = vmatpush1.msra.mxu0 %v129
    %512 = vmatprep.subr.mxu0 0.0
    %513 = vmatpush1.msra.mxu0 %v128
    %514 = vmatprep.subr.mxu0 0.0
    %515 = vmatpush1.msra.mxu0 %v127
    %516 = vmatprep.subr.mxu0 0.0
    %517 = vmatpush1.msra.mxu0 %v126
    %518 = vmatprep.subr.mxu0 0.0
    %519 = vmatpush1.msra.mxu0 %v125
    %520 = vmatprep.subr.mxu0 0.0
    %521 = vmatpush1.msra.mxu0 %v124
    %522 = vmatprep.subr.mxu0 0.0
    %523 = vmatpush1.msra.mxu0 %v123
    %524 = vmatprep.subr.mxu0 0.0
    %525 = vmatpush1.msra.mxu0 %v122
    %526 = vmatprep.subr.mxu0 0.0
    %527 = vmatpush1.msra.mxu0 %v121
    %528 = vmatprep.subr.mxu0 0.0
    %529 = vmatpush1.msra.mxu0 %v120
    %530 = vmatprep.subr.mxu0 0.0
    %531 = vmatpush1.msra.mxu0 %v119
    %532 = vmatprep.subr.mxu0 0.0
    %533 = vmatpush1.msra.mxu0 %v118
    %534 = vmatprep.subr.mxu0 0.0
    %535 = vmatpush1.msra.mxu0 %v117
    %536 = vmatprep.subr.mxu0 0.0
    %537 = vmatpush1.msra.mxu0 %v116
    %538 = vmatprep.subr.mxu0 0.0
    %539 = vmatpush1.msra.mxu0 %v115
    %540 = vmatprep.subr.mxu0 0.0
    %541 = vmatpush1.msra.mxu0 %v114
    %542 = vmatprep.subr.mxu0 0.0
    %543 = vmatpush2.msra.mxu0 0.0
    %544 = vmatprep.subr.mxu0 0.0
    %545 = vmatpush2.msra.mxu0 0.0
    %546 = vmatprep.subr.mxu0 0.0
    %547 = vmatpush2.msra.mxu0 0.0
    %548 = vmatprep.subr.mxu0 0.0
    %549 = vmatpush2.msra.mxu0 0.0
    %550 = vmatprep.subr.mxu0 0.0
    %551 = vmatpush2.msra.mxu0 0.0
    %552 = vmatprep.subr.mxu0 0.0
    %553 = vmatpush2.msra.mxu0 0.0
    %554 = vmatprep.subr.mxu0 0.0
    %555 = vmatpush2.msra.mxu0 0.0
    %556 = vmatprep.subr.mxu0 0.0
    %557 = vmatpush2.msra.mxu0 0.0
    %558 = vmatprep.subr.mxu0 0.0
    %559 = vmatpush2.msra.mxu0 0.0
    %560 = vmatprep.subr.mxu0 0.0
    %561 = vmatpush2.msra.mxu0 0.0
    %562 = vmatprep.subr.mxu0 0.0
    %563 = vmatpush2.msra.mxu0 0.0
    %564 = vmatprep.subr.mxu0 0.0
    %565 = vmatpush2.msra.mxu0 0.0
    %566 = vmatprep.subr.mxu0 0.0
    %567 = vmatpush2.msra.mxu0 0.0
    %568 = vmatprep.subr.mxu0 0.0
    %569 = vmatpush2.msra.mxu0 0.0
    %570 = vmatprep.subr.mxu0 0.0
    %571 = vmatpush2.msra.mxu0 0.0
    %572 = vmatprep.subr.mxu0 0.0
    %573 = vmatpush2.msra.mxu0 0.0
    %574 = vmatprep.mubr.f32.mxu0 0.0
    %575 = vmatmul.mubr.f32.gmra.mxu0 %v505
    %v576 = vpop.f32.mrf.mxu0
    %v577 = vadd.f32 0.0, %v576
    %v578 = vpop.f32.mrf.mxu0
    %579 = vdwg.mxu0
    %v580 = vadd.f32 %v509, %v577
    %v581 = vtanh.pop %v580
    %s582 = scalar_lea.vmem [#allocation13], 40
    %583 = vst [vmem:[%s582] sm:$0xff] %v581
    %s584 = scalar_lea.vmem [#allocation2], 48
    %v585 = vld [vmem:[%s584] sm:$0xff]
    %586 = vmatprep.subr.mxu0 0.0
    %587 = vmatpush1.msra.mxu0 %v129
    %588 = vmatprep.subr.mxu0 0.0
    %589 = vmatpush1.msra.mxu0 %v128
    %590 = vmatprep.subr.mxu0 0.0
    %591 = vmatpush1.msra.mxu0 %v127
    %592 = vmatprep.subr.mxu0 0.0
    %593 = vmatpush1.msra.mxu0 %v126
    %594 = vmatprep.subr.mxu0 0.0
    %595 = vmatpush1.msra.mxu0 %v125
    %596 = vmatprep.subr.mxu0 0.0
    %597 = vmatpush1.msra.mxu0 %v124
    %598 = vmatprep.subr.mxu0 0.0
    %599 = vmatpush1.msra.mxu0 %v123
    %600 = vmatprep.subr.mxu0 0.0
    %601 = vmatpush1.msra.mxu0 %v122
    %602 = vmatprep.subr.mxu0 0.0
    %603 = vmatpush1.msra.mxu0 %v121
    %604 = vmatprep.subr.mxu0 0.0
    %605 = vmatpush1.msra.mxu0 %v120
    %606 = vmatprep.subr.mxu0 0.0
    %607 = vmatpush1.msra.mxu0 %v119
    %608 = vmatprep.subr.mxu0 0.0
    %609 = vmatpush1.msra.mxu0 %v118
    %610 = vmatprep.subr.mxu0 0.0
    %611 = vmatpush1.msra.mxu0 %v117
    %612 = vmatprep.subr.mxu0 0.0
    %613 = vmatpush1.msra.mxu0 %v116
    %614 = vmatprep.subr.mxu0 0.0
    %615 = vmatpush1.msra.mxu0 %v115
    %616 = vmatprep.subr.mxu0 0.0
    %617 = vmatpush1.msra.mxu0 %v114
    %618 = vmatprep.subr.mxu0 0.0
    %619 = vmatpush2.msra.mxu0 0.0
    %620 = vmatprep.subr.mxu0 0.0
    %621 = vmatpush2.msra.mxu0 0.0
    %622 = vmatprep.subr.mxu0 0.0
    %623 = vmatpush2.msra.mxu0 0.0
    %624 = vmatprep.subr.mxu0 0.0
    %625 = vmatpush2.msra.mxu0 0.0
    %626 = vmatprep.subr.mxu0 0.0
    %627 = vmatpush2.msra.mxu0 0.0
    %628 = vmatprep.subr.mxu0 0.0
    %629 = vmatpush2.msra.mxu0 0.0
    %630 = vmatprep.subr.mxu0 0.0
    %631 = vmatpush2.msra.mxu0 0.0
    %632 = vmatprep.subr.mxu0 0.0
    %633 = vmatpush2.msra.mxu0 0.0
    %634 = vmatprep.subr.mxu0 0.0
    %635 = vmatpush2.msra.mxu0 0.0
    %636 = vmatprep.subr.mxu0 0.0
    %637 = vmatpush2.msra.mxu0 0.0
    %638 = vmatprep.subr.mxu0 0.0
    %639 = vmatpush2.msra.mxu0 0.0
    %640 = vmatprep.subr.mxu0 0.0
    %641 = vmatpush2.msra.mxu0 0.0
    %642 = vmatprep.subr.mxu0 0.0
    %643 = vmatpush2.msra.mxu0 0.0
    %644 = vmatprep.subr.mxu0 0.0
    %645 = vmatpush2.msra.mxu0 0.0
    %646 = vmatprep.subr.mxu0 0.0
    %647 = vmatpush2.msra.mxu0 0.0
    %648 = vmatprep.subr.mxu0 0.0
    %649 = vmatpush2.msra.mxu0 0.0
    %650 = vmatprep.mubr.f32.mxu0 0.0
    %651 = vmatmul.mubr.f32.gmra.mxu0 %v581
    %v652 = vpop.f32.mrf.mxu0
    %v653 = vadd.f32 0.0, %v652
    %v654 = vpop.f32.mrf.mxu0
    %655 = vdwg.mxu0
    %v656 = vadd.f32 %v585, %v653
    %v657 = vtanh.pop %v656
    %s658 = scalar_lea.vmem [#allocation13], 48
    %659 = vst [vmem:[%s658] sm:$0xff] %v657
    %s660 = scalar_lea.vmem [#allocation2], 56
    %v661 = vld [vmem:[%s660] sm:$0xff]
    %662 = vmatprep.subr.mxu0 0.0
    %663 = vmatpush1.msra.mxu0 %v129
    %664 = vmatprep.subr.mxu0 0.0
    %665 = vmatpush1.msra.mxu0 %v128
    %666 = vmatprep.subr.mxu0 0.0
    %667 = vmatpush1.msra.mxu0 %v127
    %668 = vmatprep.subr.mxu0 0.0
    %669 = vmatpush1.msra.mxu0 %v126
    %670 = vmatprep.subr.mxu0 0.0
    %671 = vmatpush1.msra.mxu0 %v125
    %672 = vmatprep.subr.mxu0 0.0
    %673 = vmatpush1.msra.mxu0 %v124
    %674 = vmatprep.subr.mxu0 0.0
    %675 = vmatpush1.msra.mxu0 %v123
    %676 = vmatprep.subr.mxu0 0.0
    %677 = vmatpush1.msra.mxu0 %v122
    %678 = vmatprep.subr.mxu0 0.0
    %679 = vmatpush1.msra.mxu0 %v121
    %680 = vmatprep.subr.mxu0 0.0
    %681 = vmatpush1.msra.mxu0 %v120
    %682 = vmatprep.subr.mxu0 0.0
    %683 = vmatpush1.msra.mxu0 %v119
    %684 = vmatprep.subr.mxu0 0.0
    %685 = vmatpush1.msra.mxu0 %v118
    %686 = vmatprep.subr.mxu0 0.0
    %687 = vmatpush1.msra.mxu0 %v117
    %688 = vmatprep.subr.mxu0 0.0
    %689 = vmatpush1.msra.mxu0 %v116
    %690 = vmatprep.subr.mxu0 0.0
    %691 = vmatpush1.msra.mxu0 %v115
    %692 = vmatprep.subr.mxu0 0.0
    %693 = vmatpush1.msra.mxu0 %v114
    %694 = vmatprep.subr.mxu0 0.0
    %695 = vmatpush2.msra.mxu0 0.0
    %696 = vmatprep.subr.mxu0 0.0
    %697 = vmatpush2.msra.mxu0 0.0
    %698 = vmatprep.subr.mxu0 0.0
    %699 = vmatpush2.msra.mxu0 0.0
    %700 = vmatprep.subr.mxu0 0.0
    %701 = vmatpush2.msra.mxu0 0.0
    %702 = vmatprep.subr.mxu0 0.0
    %703 = vmatpush2.msra.mxu0 0.0
    %704 = vmatprep.subr.mxu0 0.0
    %705 = vmatpush2.msra.mxu0 0.0
    %706 = vmatprep.subr.mxu0 0.0
    %707 = vmatpush2.msra.mxu0 0.0
    %708 = vmatprep.subr.mxu0 0.0
    %709 = vmatpush2.msra.mxu0 0.0
    %710 = vmatprep.subr.mxu0 0.0
    %711 = vmatpush2.msra.mxu0 0.0
    %712 = vmatprep.subr.mxu0 0.0
    %713 = vmatpush2.msra.mxu0 0.0
    %714 = vmatprep.subr.mxu0 0.0
    %715 = vmatpush2.msra.mxu0 0.0
    %716 = vmatprep.subr.mxu0 0.0
    %717 = vmatpush2.msra.mxu0 0.0
    %718 = vmatprep.subr.mxu0 0.0
    %719 = vmatpush2.msra.mxu0 0.0
    %720 = vmatprep.subr.mxu0 0.0
    %721 = vmatpush2.msra.mxu0 0.0
    %722 = vmatprep.subr.mxu0 0.0
    %723 = vmatpush2.msra.mxu0 0.0
    %724 = vmatprep.subr.mxu0 0.0
    %725 = vmatpush2.msra.mxu0 0.0
    %726 = vmatprep.mubr.f32.mxu0 0.0
    %727 = vmatmul.mubr.f32.gmra.mxu0 %v657
    %v728 = vpop.f32.mrf.mxu0
    %v729 = vadd.f32 0.0, %v728
    %v730 = vpop.f32.mrf.mxu0
    %731 = vdwg.mxu0
    %v732 = vadd.f32 %v661, %v729
    %v733 = vtanh.pop %v732
    %s734 = scalar_lea.vmem [#allocation13], 56
    %735 = vst [vmem:[%s734] sm:$0xff] %v733
    %736 = vst [vmem:[#allocation14] sm:$0xff] %v733
    %v737 = vld [vmem:[#allocation7] sm:$0xff]
    %v738 = vld [vmem:[#allocation8] sm:$0xff]
    %v739 = vld [vmem:[#allocation8 + $0x8] sm:$0xff]
    %v740 = vld [vmem:[%s4] sm:$0x1]
    %v742 = vlaneseq
    %v743 = vshrl.u32 %v742, 7
    %v744 = vsub.s32 0, %v743
    %v745 = vrot.slane %v740, %v744
    %vm747 = vcmask 130048
    %v749 = vsel %vm747, %v737, 0
    %751 = vmatprep.subr.mxu0 0.0
    %752 = vmatpush1.msra.mxu0 0.0
    %753 = vmatprep.subr.mxu0 0.0
    %754 = vmatpush1.msra.mxu0 0.0
    %755 = vmatprep.subr.mxu0 0.0
    %756 = vmatpush1.msra.mxu0 0.0
    %757 = vmatprep.subr.mxu0 0.0
    %758 = vmatpush1.msra.mxu0 0.0
    %759 = vmatprep.subr.mxu0 0.0
    %760 = vmatpush1.msra.mxu0 0.0
    %761 = vmatprep.subr.mxu0 0.0
    %762 = vmatpush1.msra.mxu0 0.0
    %763 = vmatprep.subr.mxu0 0.0
    %764 = vmatpush1.msra.mxu0 0.0
    %765 = vmatprep.subr.mxu0 0.0
    %766 = vmatpush1.msra.mxu0 0.0
    %767 = vmatprep.subr.mxu0 0.0
    %768 = vmatpush1.msra.mxu0 0.0
    %769 = vmatprep.subr.mxu0 0.0
    %770 = vmatpush1.msra.mxu0 0.0
    %771 = vmatprep.subr.mxu0 0.0
    %772 = vmatpush1.msra.mxu0 0.0
    %773 = vmatprep.subr.mxu0 0.0
    %774 = vmatpush1.msra.mxu0 0.0
    %775 = vmatprep.subr.mxu0 0.0
    %776 = vmatpush1.msra.mxu0 0.0
    %777 = vmatprep.subr.mxu0 0.0
    %778 = vmatpush1.msra.mxu0 0.0
    %779 = vmatprep.subr.mxu0 0.0
    %780 = vmatpush1.msra.mxu0 %v739
    %781 = vmatprep.subr.mxu0 0.0
    %782 = vmatpush1.msra.mxu0 %v738
    %783 = vmatprep.subr.mxu0 0.0
    %784 = vmatpush2.msra.mxu0 0.0
    %785 = vmatprep.subr.mxu0 0.0
    %786 = vmatpush2.msra.mxu0 0.0
    %787 = vmatprep.subr.mxu0 0.0
    %788 = vmatpush2.msra.mxu0 0.0
    %789 = vmatprep.subr.mxu0 0.0
    %790 = vmatpush2.msra.mxu0 0.0
    %791 = vmatprep.subr.mxu0 0.0
    %792 = vmatpush2.msra.mxu0 0.0
    %793 = vmatprep.subr.mxu0 0.0
    %794 = vmatpush2.msra.mxu0 0.0
    %795 = vmatprep.subr.mxu0 0.0
    %796 = vmatpush2.msra.mxu0 0.0
    %797 = vmatprep.subr.mxu0 0.0
    %798 = vmatpush2.msra.mxu0 0.0
    %799 = vmatprep.subr.mxu0 0.0
    %800 = vmatpush2.msra.mxu0 0.0
    %801 = vmatprep.subr.mxu0 0.0
    %802 = vmatpush2.msra.mxu0 0.0
    %803 = vmatprep.subr.mxu0 0.0
    %804 = vmatpush2.msra.mxu0 0.0
    %805 = vmatprep.subr.mxu0 0.0
    %806 = vmatpush2.msra.mxu0 0.0
    %807 = vmatprep.subr.mxu0 0.0
    %808 = vmatpush2.msra.mxu0 0.0
    %809 = vmatprep.subr.mxu0 0.0
    %810 = vmatpush2.msra.mxu0 0.0
    %811 = vmatprep.subr.mxu0 0.0
    %812 = vmatpush2.msra.mxu0 0.0
    %813 = vmatprep.subr.mxu0 0.0
    %814 = vmatpush2.msra.mxu0 0.0
    %815 = vmatprep.mubr.f32.mxu0 0.0
    %816 = vmatmul.mubr.f32.gmra.mxu0 %v749
    %v817 = vpop.f32.mrf.mxu0
    %v818 = vadd.f32 %v745, %v817
    %v819 = vpop.f32.mrf.mxu0
    %820 = vdwg.mxu0
    %v821 = vtanh.pop %v818
    %v822 = vld [vmem:[#allocation10] sm:$0xff]
    %v823 = vld [vmem:[#allocation10 + $0x8] sm:$0xff]
    %v824 = vld [vmem:[#allocation10 + $0x10] sm:$0xff]
    %v825 = vld [vmem:[#allocation10 + $0x18] sm:$0xff]
    %v826 = vld [vmem:[#allocation10 + $0x20] sm:$0xff]
    %v827 = vld [vmem:[#allocation10 + $0x28] sm:$0xff]
    %v828 = vld [vmem:[#allocation10 + $0x30] sm:$0xff]
    %v829 = vld [vmem:[#allocation10 + $0x38] sm:$0xff]
    %v830 = vld [vmem:[#allocation10 + $0x40] sm:$0xff]
    %v831 = vld [vmem:[#allocation10 + $0x48] sm:$0xff]
    %v832 = vld [vmem:[#allocation10 + $0x50] sm:$0xff]
    %v833 = vld [vmem:[#allocation10 + $0x58] sm:$0xff]
    %v834 = vld [vmem:[#allocation10 + $0x60] sm:$0xff]
    %v835 = vld [vmem:[#allocation10 + $0x68] sm:$0xff]
    %v836 = vld [vmem:[#allocation10 + $0x70] sm:$0xff]
    %v837 = vld [vmem:[#allocation10 + $0x78] sm:$0xff]
    %v838 = vld [vmem:[#allocation11] sm:$0xff]
    %v839 = vld [vmem:[#allocation11 + $0x8] sm:$0xff]
    %v841 = vsel %vm747, %v821, 0
    %843 = vmatprep.subr.mxu0 0.0
    %844 = vmatpush1.msra.mxu0 0.0
    %845 = vmatprep.subr.mxu0 0.0
    %846 = vmatpush1.msra.mxu0 0.0
    %847 = vmatprep.subr.mxu0 0.0
    %848 = vmatpush1.msra.mxu0 0.0
    %849 = vmatprep.subr.mxu0 0.0
    %850 = vmatpush1.msra.mxu0 0.0
    %851 = vmatprep.subr.mxu0 0.0
    %852 = vmatpush1.msra.mxu0 0.0
    %853 = vmatprep.subr.mxu0 0.0
    %854 = vmatpush1.msra.mxu0 0.0
    %855 = vmatprep.subr.mxu0 0.0
    %856 = vmatpush1.msra.mxu0 0.0
    %857 = vmatprep.subr.mxu0 0.0
    %858 = vmatpush1.msra.mxu0 0.0
    %859 = vmatprep.subr.mxu0 0.0
    %860 = vmatpush1.msra.mxu0 0.0
    %861 = vmatprep.subr.mxu0 0.0
    %862 = vmatpush1.msra.mxu0 0.0
    %863 = vmatprep.subr.mxu0 0.0
    %864 = vmatpush1.msra.mxu0 0.0
    %865 = vmatprep.subr.mxu0 0.0
    %866 = vmatpush1.msra.mxu0 0.0
    %867 = vmatprep.subr.mxu0 0.0
    %868 = vmatpush1.msra.mxu0 0.0
    %869 = vmatprep.subr.mxu0 0.0
    %870 = vmatpush1.msra.mxu0 0.0
    %871 = vmatprep.subr.mxu0 0.0
    %872 = vmatpush1.msra.mxu0 %v839
    %873 = vmatprep.subr.mxu0 0.0
    %874 = vmatpush1.msra.mxu0 %v838
    %875 = vmatprep.subr.mxu0 0.0
    %876 = vmatpush2.msra.mxu0 0.0
    %877 = vmatprep.subr.mxu0 0.0
    %878 = vmatpush2.msra.mxu0 0.0
    %879 = vmatprep.subr.mxu0 0.0
    %880 = vmatpush2.msra.mxu0 0.0
    %881 = vmatprep.subr.mxu0 0.0
    %882 = vmatpush2.msra.mxu0 0.0
    %883 = vmatprep.subr.mxu0 0.0
    %884 = vmatpush2.msra.mxu0 0.0
    %885 = vmatprep.subr.mxu0 0.0
    %886 = vmatpush2.msra.mxu0 0.0
    %887 = vmatprep.subr.mxu0 0.0
    %888 = vmatpush2.msra.mxu0 0.0
    %889 = vmatprep.subr.mxu0 0.0
    %890 = vmatpush2.msra.mxu0 0.0
    %891 = vmatprep.subr.mxu0 0.0
    %892 = vmatpush2.msra.mxu0 0.0
    %893 = vmatprep.subr.mxu0 0.0
    %894 = vmatpush2.msra.mxu0 0.0
    %895 = vmatprep.subr.mxu0 0.0
    %896 = vmatpush2.msra.mxu0 0.0
    %897 = vmatprep.subr.mxu0 0.0
    %898 = vmatpush2.msra.mxu0 0.0
    %899 = vmatprep.subr.mxu0 0.0
    %900 = vmatpush2.msra.mxu0 0.0
    %901 = vmatprep.subr.mxu0 0.0
    %902 = vmatpush2.msra.mxu0 0.0
    %903 = vmatprep.subr.mxu0 0.0
    %904 = vmatpush2.msra.mxu0 0.0
    %905 = vmatprep.subr.mxu0 0.0
    %906 = vmatpush2.msra.mxu0 0.0
    %907 = vmatprep.mubr.f32.mxu0 0.0
    %908 = vmatmul.mubr.f32.gmra.mxu0 %v841
    %v909 = vpop.f32.mrf.mxu0
    %v910 = vadd.f32 0.0, %v909
    %v911 = vpop.f32.mrf.mxu0
    %912 = vdwg.mxu0
    %913 = vmatprep.subr.mxu0 0.0
    %914 = vmatpush1.msra.mxu0 %v837
    %915 = vmatprep.subr.mxu0 0.0
    %916 = vmatpush1.msra.mxu0 %v836
    %917 = vmatprep.subr.mxu0 0.0
    %918 = vmatpush1.msra.mxu0 %v835
    %919 = vmatprep.subr.mxu0 0.0
    %920 = vmatpush1.msra.mxu0 %v834
    %921 = vmatprep.subr.mxu0 0.0
    %922 = vmatpush1.msra.mxu0 %v833
    %923 = vmatprep.subr.mxu0 0.0
    %924 = vmatpush1.msra.mxu0 %v832
    %925 = vmatprep.subr.mxu0 0.0
    %926 = vmatpush1.msra.mxu0 %v831
    %927 = vmatprep.subr.mxu0 0.0
    %928 = vmatpush1.msra.mxu0 %v830
    %929 = vmatprep.subr.mxu0 0.0
    %930 = vmatpush1.msra.mxu0 %v829
    %931 = vmatprep.subr.mxu0 0.0
    %932 = vmatpush1.msra.mxu0 %v828
    %933 = vmatprep.subr.mxu0 0.0
    %934 = vmatpush1.msra.mxu0 %v827
    %935 = vmatprep.subr.mxu0 0.0
    %936 = vmatpush1.msra.mxu0 %v826
    %937 = vmatprep.subr.mxu0 0.0
    %938 = vmatpush1.msra.mxu0 %v825
    %939 = vmatprep.subr.mxu0 0.0
    %940 = vmatpush1.msra.mxu0 %v824
    %941 = vmatprep.subr.mxu0 0.0
    %942 = vmatpush1.msra.mxu0 %v823
    %943 = vmatprep.subr.mxu0 0.0
    %944 = vmatpush1.msra.mxu0 %v822
    %945 = vmatprep.subr.mxu0 0.0
    %946 = vmatpush2.msra.mxu0 0.0
    %947 = vmatprep.subr.mxu0 0.0
    %948 = vmatpush2.msra.mxu0 0.0
    %949 = vmatprep.subr.mxu0 0.0
    %950 = vmatpush2.msra.mxu0 0.0
    %951 = vmatprep.subr.mxu0 0.0
    %952 = vmatpush2.msra.mxu0 0.0
    %953 = vmatprep.subr.mxu0 0.0
    %954 = vmatpush2.msra.mxu0 0.0
    %955 = vmatprep.subr.mxu0 0.0
    %956 = vmatpush2.msra.mxu0 0.0
    %957 = vmatprep.subr.mxu0 0.0
    %958 = vmatpush2.msra.mxu0 0.0
    %959 = vmatprep.subr.mxu0 0.0
    %960 = vmatpush2.msra.mxu0 0.0
    %961 = vmatprep.subr.mxu0 0.0
    %962 = vmatpush2.msra.mxu0 0.0
    %963 = vmatprep.subr.mxu0 0.0
    %964 = vmatpush2.msra.mxu0 0.0
    %965 = vmatprep.subr.mxu0 0.0
    %966 = vmatpush2.msra.mxu0 0.0
    %967 = vmatprep.subr.mxu0 0.0
    %968 = vmatpush2.msra.mxu0 0.0
    %969 = vmatprep.subr.mxu0 0.0
    %970 = vmatpush2.msra.mxu0 0.0
    %971 = vmatprep.subr.mxu0 0.0
    %972 = vmatpush2.msra.mxu0 0.0
    %973 = vmatprep.subr.mxu0 0.0
    %974 = vmatpush2.msra.mxu0 0.0
    %975 = vmatprep.subr.mxu0 0.0
    %976 = vmatpush2.msra.mxu0 0.0
    %977 = vmatprep.mubr.f32.mxu0 0.0
    %978 = vmatmul.mubr.f32.gmra.mxu0 %v733
    %v979 = vpop.f32.mrf.mxu0
    %v980 = vadd.f32 %v910, %v979
    %v981 = vpop.f32.mrf.mxu0
    %982 = vdwg.mxu0
    %v983 = vld [vmem:[%s7] sm:$0x1]
    %v985 = vlaneseq
    %v986 = vshrl.u32 %v985, 7
    %v987 = vsub.s32 0, %v986
    %v988 = vrot.slane %v983, %v987
    %v990 = vadd.f32 %v980, %v988
    %v991 = vtanh.pop %v990
    %992 = vst [vmem:[#allocation16] sm:$0xff] %v991
    // Predicated region
    $region58: #{tpu_custom_call.1} parent=1 // pred_check
      _
    $region59: #{tpu_custom_call.1} parent=1 // pred_check_branch
      %994 = sbr.rel (0) target = $region61
    $region60: #{tpu_custom_call.1} parent=1 // pred_region
      %s996 = ssub.s32 1024, 1024
      %997 = vsyncadd [#allocation4], %s996
      %s998 = sshll.u32 [#allocation13], 4
      %s999 = int_to_ptr.vmem [resolvable:$true] %s998
      %1004 = dma.vmem_to_hbm [thread:$0]  %s999, 1024, %s8, [#allocation4], 128, 128, 8
    $region61: #{tpu_custom_call.1} parent=1 // pred_fallthru
      _
    // Predicated region
    $region62: #{tpu_custom_call.1} parent=1 // pred_check
      _
    $region63: #{tpu_custom_call.1} parent=1 // pred_check_branch
      %1006 = sbr.rel (0) target = $region65
    $region64: #{tpu_custom_call.1} parent=1 // pred_region
      %s1008 = ssub.s32 128, 128
      %1009 = vsyncadd [#allocation15], %s1008
      %s1011 = sshll.u32 [#allocation14], 4
      %s1012 = int_to_ptr.vmem [resolvable:$true] %s1011
      %1014 = dma.vmem_to_hbm [thread:$0]  %s1012, 128, %s9, [#allocation15]
    $region65: #{tpu_custom_call.1} parent=1 // pred_fallthru
      _
    // Predicated region
    $region66: #{tpu_custom_call.1} parent=1 // pred_check
      _
    $region67: #{tpu_custom_call.1} parent=1 // pred_check_branch
      %1016 = sbr.rel (0) target = $region69
    $region68: #{tpu_custom_call.1} parent=1 // pred_region
      %s1018 = ssub.s32 128, 128
      %1019 = vsyncadd [#allocation15], %s1018
      %s1021 = sshll.u32 [#allocation16], 4
      %s1022 = int_to_ptr.vmem [resolvable:$true] %s1021
      %1024 = dma.vmem_to_hbm [thread:$0]  %s1022, 128, %s10, [#allocation15]
    $region69: #{tpu_custom_call.1} parent=1 // pred_fallthru
      _
    // Predicated region
    $region70: #{tpu_custom_call.1} parent=1 // pred_check
      _
    $region71: #{tpu_custom_call.1} parent=1 // pred_check_branch
      %1026 = sbr.rel (0) target = $region73
    $region72: #{tpu_custom_call.1} parent=1 // pred_region
      %1027 = dma.done [#allocation4], 1024
    $region73: #{tpu_custom_call.1} parent=1 // pred_fallthru
      _
    // Predicated region
    $region74: #{tpu_custom_call.1} parent=1 // pred_check
      _
    $region75: #{tpu_custom_call.1} parent=1 // pred_check_branch
      %1029 = sbr.rel (0) target = $region77
    $region76: #{tpu_custom_call.1} parent=1 // pred_region
      %1030 = dma.done [#allocation15], 128
    $region77: #{tpu_custom_call.1} parent=1 // pred_fallthru
      _
    // Predicated region
    $region78: #{tpu_custom_call.1} parent=1 // pred_check
      _
    $region79: #{tpu_custom_call.1} parent=1 // pred_check_branch
      %1032 = sbr.rel (0) target = $region81
    $region80: #{tpu_custom_call.1} parent=1 // pred_region
      %1033 = dma.done [#allocation15], 128
    $region81: #{tpu_custom_call.1} parent=1 // pred_fallthru
      _
    %1034 = vsyncpa [#allocation3], 1
    %1035 = vsyncpa [#allocation6], 1
    %1036 = vsyncpa [#allocation9], 1
    %1037 = vsyncpa [#allocation12], 1
    %1038 = vsyncpa [#allocation4], 1
    %1039 = vsyncpa [#allocation15], 1

</llo_original>
